<compile_context>
chip_gen: v5e
topology: v5e:2x2
jax: 0.10.0
libtpu: 0.0.40
codegen_flags: <defaults>
</compile_context>

<pallas_src>
import functools

import jax
import jax.numpy as jnp
from jax.experimental import pallas as pl
from jax.experimental.pallas import tpu as pltpu

TRUNK_DIM = 384     # packed hidden rows: [0:200)=actor a1, [256:356)=critic c1, rest zero
A_OFF = 0
C_OFF = 256


def _round_up(n, m):
    return ((n + m - 1) // m) * m


def _net_kernel(a_dim, xT_ref, wtT_ref, bt_ref, whT_ref, bh_ref, o_ref):
    # xT  : (SP, TB)               state (zero-padded to SP rows), batch on lanes
    # wtT : (TRUNK_DIM, SP)        packed trunk weights (actor + critic), transposed
    # bt  : (TRUNK_DIM, 1)         packed trunk biases
    # whT : (HEAD_ROWS, TRUNK_DIM) packed head weights (mu | sigma | v), transposed
    # bh  : (HEAD_ROWS, 1)         packed head biases
    # o   : (HEAD_ROWS, TB)        rows [0,a)=mu, [a,2a)=sigma, 2a=value, rest pad
    xT = xT_ref[...]

    # Fused trunk (actor 200 + critic 100) in one MXU matmul; relu6.
    # Zero-padded rows of wtT/bt give relu6(0) = 0, so they never leak into heads.
    h = jnp.clip(
        jnp.dot(wtT_ref[...], xT, preferred_element_type=jnp.float32)
        + bt_ref[...], 0.0, 6.0)                                   # (TRUNK_DIM, TB)

    # Fused heads (mu | sigma | value) in one MXU matmul with only HEAD_ROWS
    # output sublanes: transcendentals below touch 8*TB elems, not TB*128.
    pre = (jnp.dot(whT_ref[...], h, preferred_element_type=jnp.float32)
           + bh_ref[...])                                          # (HEAD_ROWS, TB)

    mu_all = 2.0 * jnp.tanh(pre)                                   # EUP
    sig_all = (jnp.maximum(pre, 0.0)
               + jnp.log1p(jnp.exp(-jnp.abs(pre))) + 1e-4)         # stable softplus

    row = jax.lax.broadcasted_iota(jnp.int32, pre.shape, 0)
    out = jnp.where(row < a_dim, mu_all,
                    jnp.where(row < 2 * a_dim, sig_all, pre))

    o_ref[...] = out.astype(o_ref.dtype)                           # lane-dense store


def pack_params(p):
    """Pack the 11 nn.Linear tensors into 4 transposed, sublane-packed f32 slabs."""
    s_dim = p["wa1"].shape[0]
    na = p["wa1"].shape[1]          # 200
    nc = p["wc1"].shape[1]          # 100
    a_dim = p["wmu"].shape[1]
    assert na <= C_OFF and C_OFF + nc <= TRUNK_DIM

    sp = _round_up(s_dim, 8)                    # padded state dim (sublanes of xT)
    head_rows = _round_up(2 * a_dim + 1, 8)     # mu | sigma | v, padded to sublane mult

    wtT = jnp.zeros((TRUNK_DIM, sp), jnp.float32)
    wtT = wtT.at[A_OFF:A_OFF + na, :s_dim].set(p["wa1"].T)
    wtT = wtT.at[C_OFF:C_OFF + nc, :s_dim].set(p["wc1"].T)

    bt = jnp.zeros((TRUNK_DIM, 1), jnp.float32)
    bt = bt.at[A_OFF:A_OFF + na, 0].set(p["ba1"].reshape(-1))
    bt = bt.at[C_OFF:C_OFF + nc, 0].set(p["bc1"].reshape(-1))

    whT = jnp.zeros((head_rows, TRUNK_DIM), jnp.float32)
    whT = whT.at[0:a_dim, A_OFF:A_OFF + na].set(p["wmu"].T)
    whT = whT.at[a_dim:2 * a_dim, A_OFF:A_OFF + na].set(p["wsig"].T)
    whT = whT.at[2 * a_dim, C_OFF:C_OFF + nc].set(p["wv"].reshape(-1))

    bh = jnp.zeros((head_rows, 1), jnp.float32)
    bh = bh.at[0:a_dim, 0].set(p["bmu"].reshape(-1))
    bh = bh.at[a_dim:2 * a_dim, 0].set(p["bsig"].reshape(-1))
    bh = bh.at[2 * a_dim, 0].set(p["bv"].reshape(-1)[0])

    return dict(wtT=wtT, bt=bt, whT=whT, bh=bh, a_dim=a_dim, s_dim=s_dim)


def _choose_tiling(b, tb_max=2048, min_steps=2):
    """Return (num_steps, lane_tile). Tiles are multiples of 128 lanes.

    Big tiles amortize the ~0.35us/step overhead; when the batch allows it we
    emit >=2 steps so v7x's two TensorCores can split the "parallel" axis.
    """
    b0 = _round_up(max(b, 1), 128)
    if b0 <= 128:
        return 1, 128
    steps = max(min_steps, -(-b0 // tb_max))
    tile = _round_up(-(-b0 // steps), 128)
    return steps, tile


def net_forward(x, packed):
    """x: (B, s_dim) f32. packed: output of pack_params. Returns (mu, sigma, values)."""
    a_dim, s_dim = packed["a_dim"], packed["s_dim"]
    wtT, bt, whT, bh = packed["wtT"], packed["bt"], packed["whT"], packed["bh"]
    sp = wtT.shape[1]
    head_rows = whT.shape[0]

    B = x.shape[0]
    assert x.shape[1] == s_dim

    steps, tb = _choose_tiling(B)
    bp = steps * tb

    # Transposed, zero-padded activation slab: (sp, bp), batch on lanes.
    xT = jnp.zeros((sp, bp), jnp.float32)
    xT = xT.at[:s_dim, :B].set(x.astype(jnp.float32).T)

    kernel = functools.partial(_net_kernel, a_dim)

    outT = pl.pallas_call(
        kernel,
        out_shape=jax.ShapeDtypeStruct((head_rows, bp), jnp.float32),
        grid=(steps,),
        in_specs=[
            pl.BlockSpec((sp, tb), lambda i: (0, i)),
            pl.BlockSpec(wtT.shape, lambda i: (0, 0)),   # weights stay VMEM-resident
            pl.BlockSpec(bt.shape, lambda i: (0, 0)),
            pl.BlockSpec(whT.shape, lambda i: (0, 0)),
            pl.BlockSpec(bh.shape, lambda i: (0, 0)),
        ],
        out_specs=pl.BlockSpec((head_rows, tb), lambda i: (0, i)),
        compiler_params=pltpu.CompilerParams(
            dimension_semantics=("parallel",)),
    )(xT, wtT, bt, whT, bh)

    outT = outT[:, :B]                       # tiny read-back: head_rows x B
    mu = outT[0:a_dim, :].T
    sigma = outT[a_dim:2 * a_dim, :].T
    values = outT[2 * a_dim:2 * a_dim + 1, :].T
    return mu, sigma, values


def init_params(key, s_dim, a_dim):
    """Deterministic init mimicking nn.Linear (uniform +-1/sqrt(fan_in)).
    Weights stored as (in_features, out_features)."""
    def linear(key, fan_in, fan_out):
        kw, kb = jax.random.split(key)
        bound = 1.0 / jnp.sqrt(jnp.float32(fan_in))
        w = jax.random.uniform(kw, (fan_in, fan_out), jnp.float32, -bound, bound)
        b = jax.random.uniform(kb, (1, fan_out), jnp.float32, -bound, bound)
        return w, b

    k1, k2, k3, k4, k5 = jax.random.split(key, 5)
    wa1, ba1 = linear(k1, s_dim, 200)
    wmu, bmu = linear(k2, 200, a_dim)
    wsig, bsig = linear(k3, 200, a_dim)
    wc1, bc1 = linear(k4, s_dim, 100)
    wv, bv = linear(k5, 100, 1)
    return dict(wa1=wa1, ba1=ba1, wmu=wmu, bmu=bmu,
                wsig=wsig, bsig=bsig, wc1=wc1, bc1=bc1, wv=wv, bv=bv)


def reference_forward(x, p):
    a1 = jnp.clip(x @ p["wa1"] + p["ba1"], 0.0, 6.0)
    mu = 2.0 * jnp.tanh(a1 @ p["wmu"] + p["bmu"])
    sigma = jax.nn.softplus(a1 @ p["wsig"] + p["bsig"]) + 1e-4
    c1 = jnp.clip(x @ p["wc1"] + p["bc1"], 0.0, 6.0)
    values = c1 @ p["wv"] + p["bv"]
    return mu, sigma, values


if __name__ == "__main__":
    key = jax.random.PRNGKey(0)
    kx, kp = jax.random.split(key)

    batch, s_dim, a_dim = 8, 4, 2
    x = jax.random.normal(kx, (batch, s_dim), dtype=jnp.float32)
    params = init_params(kp, s_dim, a_dim)
    packed = pack_params(params)

    mu, sigma, values = net_forward(x, packed)
    jax.block_until_ready((mu, sigma, values))

    mu_r, sigma_r, values_r = reference_forward(x, params)
    assert mu.shape == (batch, a_dim) and sigma.shape == (batch, a_dim)
    assert values.shape == (batch, 1)
    assert jnp.allclose(mu, mu_r, atol=1e-5), "mu mismatch"
    assert jnp.allclose(sigma, sigma_r, atol=1e-5), "sigma mismatch"
    assert jnp.allclose(values, values_r, atol=1e-5), "values mismatch"

    # TODO(synk): choose_action / loss_func use torch.distributions.Normal
    # sampling & log_prob; they are not part of the forward pass and are left
    # to plain JAX outside the kernel.
    print("KERNEL_OK")
</pallas_src>

<mosaic_0001>
module attributes {stable_mosaic.version = 11 : i64} {
  func.func @_net_kernel(%arg0: i32, %arg1: memref<8x128xf32, #tpu.memory_space<vmem>>, %arg2: memref<384x8xf32, #tpu.memory_space<vmem>>, %arg3: memref<384x1xf32, #tpu.memory_space<vmem>>, %arg4: memref<8x384xf32, #tpu.memory_space<vmem>>, %arg5: memref<8x1xf32, #tpu.memory_space<vmem>>, %arg6: memref<8x128xf32, #tpu.memory_space<vmem>>) attributes {dimension_semantics = [#tpu.dimension_semantics<parallel>], iteration_bounds = array<i64: 1>, scalar_prefetch = 0 : i64, scratch_operands = 0 : i64, tpu.core_type = #tpu.core_type<tc>, window_params = [{transform_indices = @transform_0, window_bounds = array<i64: 8, 128>}, {pipeline_mode = #tpu.pipeline_mode<synchronous>, transform_indices = @transform_1, window_bounds = array<i64: 384, 8>}, {pipeline_mode = #tpu.pipeline_mode<synchronous>, transform_indices = @transform_2, window_bounds = array<i64: 384, 1>}, {pipeline_mode = #tpu.pipeline_mode<synchronous>, transform_indices = @transform_3, window_bounds = array<i64: 8, 384>}, {pipeline_mode = #tpu.pipeline_mode<synchronous>, transform_indices = @transform_4, window_bounds = array<i64: 8, 1>}, {transform_indices = @transform_5, window_bounds = array<i64: 8, 128>}]} {
    %c0 = arith.constant 0 : index
    %c0_0 = arith.constant 0 : index
    %0 = vector.load %arg1[%c0, %c0_0] : memref<8x128xf32, #tpu.memory_space<vmem>>, vector<8x128xf32>
    %c0_1 = arith.constant 0 : index
    %c0_2 = arith.constant 0 : index
    %1 = vector.load %arg2[%c0_1, %c0_2] : memref<384x8xf32, #tpu.memory_space<vmem>>, vector<384x8xf32>
    %cst = arith.constant dense<0.000000e+00> : vector<384x128xf32>
    %2 = tpu.matmul %1, %0, %cst {dimension_numbers = #tpu.dot_dimension_numbers<[1], [0], [0], [1], [0, 0, 1, 1], [], []>} : vector<384x8xf32>, vector<8x128xf32>, vector<384x128xf32> -> vector<384x128xf32>
    %c0_3 = arith.constant 0 : index
    %c0_4 = arith.constant 0 : index
    %3 = vector.load %arg3[%c0_3, %c0_4] : memref<384x1xf32, #tpu.memory_space<vmem>>, vector<384x1xf32>
    %4 = vector.broadcast %3 : vector<384x1xf32> to vector<384x128xf32>
    %5 = arith.addf %2, %4 : vector<384x128xf32>
    %cst_5 = arith.constant 0.000000e+00 : f32
    %cst_6 = arith.constant 6.000000e+00 : f32
    %6 = vector.broadcast %cst_5 : f32 to vector<384x128xf32>
    %7 = arith.maximumf %6, %5 : vector<384x128xf32>
    %8 = vector.broadcast %cst_6 : f32 to vector<384x128xf32>
    %9 = arith.minimumf %8, %7 : vector<384x128xf32>
    %c0_7 = arith.constant 0 : index
    %c0_8 = arith.constant 0 : index
    %10 = vector.load %arg4[%c0_7, %c0_8] : memref<8x384xf32, #tpu.memory_space<vmem>>, vector<8x384xf32>
    %cst_9 = arith.constant dense<0.000000e+00> : vector<8x128xf32>
    %11 = tpu.matmul %10, %9, %cst_9 {dimension_numbers = #tpu.dot_dimension_numbers<[1], [0], [0], [1], [0, 0, 1, 1], [], []>} : vector<8x384xf32>, vector<384x128xf32>, vector<8x128xf32> -> vector<8x128xf32>
    %c0_10 = arith.constant 0 : index
    %c0_11 = arith.constant 0 : index
    %12 = vector.load %arg5[%c0_10, %c0_11] : memref<8x1xf32, #tpu.memory_space<vmem>>, vector<8x1xf32>
    %13 = vector.broadcast %12 : vector<8x1xf32> to vector<8x128xf32>
    %14 = arith.addf %11, %13 : vector<8x128xf32>
    %15 = math.tanh %14 : vector<8x128xf32>
    %cst_12 = arith.constant 2.000000e+00 : f32
    %16 = vector.broadcast %cst_12 : f32 to vector<8x128xf32>
    %17 = arith.mulf %16, %15 : vector<8x128xf32>
    %cst_13 = arith.constant 0.000000e+00 : f32
    %18 = vector.broadcast %cst_13 : f32 to vector<8x128xf32>
    %19 = arith.maximumf %14, %18 : vector<8x128xf32>
    %20 = math.absf %14 : vector<8x128xf32>
    %cst_14 = arith.constant 0.000000e+00 : f32
    %21 = vector.broadcast %cst_14 : f32 to vector<8x128xf32>
    %22 = arith.subf %21, %20 : vector<8x128xf32>
    %23 = math.exp %22 : vector<8x128xf32>
    %24 = math.log1p %23 : vector<8x128xf32>
    %25 = arith.addf %19, %24 : vector<8x128xf32>
    %cst_15 = arith.constant 9.99999974E-5 : f32
    %26 = vector.broadcast %cst_15 : f32 to vector<8x128xf32>
    %27 = arith.addf %25, %26 : vector<8x128xf32>
    %28 = tpu.iota {dimensions = array<i32: 0>} : vector<8x128xi32>
    %c2_i32 = arith.constant 2 : i32
    %29 = vector.broadcast %c2_i32 : i32 to vector<8x128xi32>
    %30 = arith.cmpi slt, %28, %29 : vector<8x128xi32>
    %c4_i32 = arith.constant 4 : i32
    %31 = vector.broadcast %c4_i32 : i32 to vector<8x128xi32>
    %32 = arith.cmpi slt, %28, %31 : vector<8x128xi32>
    %33 = arith.select %32, %27, %14 : vector<8x128xi1>, vector<8x128xf32>
    %34 = arith.select %30, %17, %33 : vector<8x128xi1>, vector<8x128xf32>
    %c0_16 = arith.constant 0 : index
    %c0_17 = arith.constant 0 : index
    %35 = vector.load %arg6[%c0_16, %c0_17] : memref<8x128xf32, #tpu.memory_space<vmem>>, vector<8x128xf32>
    tpu.vector_store %arg6[%c0_16, %c0_17], %34 {strides = array<i32>} : memref<8x128xf32, #tpu.memory_space<vmem>>, vector<8x128xf32>,
    return
  }
  func.func @transform_0(%arg0: i32) -> (i32, i32) {
    %c0_i32 = arith.constant 0 : i32
    %c0_i32_0 = arith.constant 0 : i32
    return %c0_i32, %arg0 : i32, i32
  }
  func.func @transform_1(%arg0: i32) -> (i32, i32) {
    %c0_i32 = arith.constant 0 : i32
    %c0_i32_0 = arith.constant 0 : i32
    %c0_i32_1 = arith.constant 0 : i32
    return %c0_i32, %c0_i32_0 : i32, i32
  }
  func.func @transform_2(%arg0: i32) -> (i32, i32) {
    %c0_i32 = arith.constant 0 : i32
    %c0_i32_0 = arith.constant 0 : i32
    %c0_i32_1 = arith.constant 0 : i32
    return %c0_i32, %c0_i32_0 : i32, i32
  }
  func.func @transform_3(%arg0: i32) -> (i32, i32) {
    %c0_i32 = arith.constant 0 : i32
    %c0_i32_0 = arith.constant 0 : i32
    %c0_i32_1 = arith.constant 0 : i32
    return %c0_i32, %c0_i32_0 : i32, i32
  }
  func.func @transform_4(%arg0: i32) -> (i32, i32) {
    %c0_i32 = arith.constant 0 : i32
    %c0_i32_0 = arith.constant 0 : i32
    %c0_i32_1 = arith.constant 0 : i32
    return %c0_i32, %c0_i32_0 : i32, i32
  }
  func.func @transform_5(%arg0: i32) -> (i32, i32) {
    %c0_i32 = arith.constant 0 : i32
    %c0_i32_0 = arith.constant 0 : i32
    return %c0_i32, %arg0 : i32, i32
  }
}

</mosaic_0001>

<llo_original>
// kernel: tpu_custom_call.1
$region0: #{tpu_custom_call.1}
  #allocation0 [shape = 'u32[]', space=smem, size = 0x4, offset = 0x4, fixed_abs, tag = 'smem constant byte address 0x4 - core index']
  #allocation1 [shape = 'u32[72,128]{1,0:T(1,128)}', space=vmem, size = 0x9000, scoped, tag = 'internal scratch']
  %s0 = inlined_call_operand.vmem [shape: f32[8,128], index: 0, kind: input, shape index: {}]
  %s1 = inlined_call_operand.vmem [shape: f32[384,8], index: 1, kind: input, shape index: {}]
  %s2 = inlined_call_operand.vmem [shape: f32[384,1], index: 2, kind: input, shape index: {}]
  %s3 = inlined_call_operand.vmem [shape: f32[8,384], index: 3, kind: input, shape index: {}]
  %s4 = inlined_call_operand.vmem [shape: f32[8,1], index: 4, kind: input, shape index: {}]
  %s5 = inlined_call_operand.hbm [shape: f32[8,128], index: 5, kind: output, shape index: {}]
  %s6 = sld [smem:[#allocation0]]
  $region30: #{tpu_custom_call.1} parent=0
    _
  %s8 = ssub.s32 1, %s6
  %s9 = scalar_select 0, %s8, %s6
  $region1: #{tpu_custom_call.1} parent=0
    #allocation2 [shape = 'u8[4096]{0}', space=vmem, size = 0x1000, scoped, tag = 'output window, operand 0, single buffered']
    #allocation3 [shape = 's32[1]{0}', space=sflag, size = 0x4, scoped, tag = 'scoped memory for tpu_custom_call.1']
    %10 = vsyncpa [#allocation3], 0
    // Predicated region
    $region2: #{tpu_custom_call.1} parent=1 // pred_check
      _
    $region3: #{tpu_custom_call.1} parent=1 // pred_check_branch
      %12 = sbr.rel (0) target = $region5
    $region4: #{tpu_custom_call.1} parent=1 // pred_region
      _
    $region5: #{tpu_custom_call.1} parent=1 // pred_fallthru
      _
    // Predicated region
    $region6: #{tpu_custom_call.1} parent=1 // pred_check
      _
    $region7: #{tpu_custom_call.1} parent=1 // pred_check_branch
      %14 = sbr.rel (0) target = $region9
    $region8: #{tpu_custom_call.1} parent=1 // pred_region
      _
    $region9: #{tpu_custom_call.1} parent=1 // pred_fallthru
      _
    // Predicated region
    $region10: #{tpu_custom_call.1} parent=1 // pred_check
      _
    $region11: #{tpu_custom_call.1} parent=1 // pred_check_branch
      %16 = sbr.rel (0) target = $region13
    $region12: #{tpu_custom_call.1} parent=1 // pred_region
      _
    $region13: #{tpu_custom_call.1} parent=1 // pred_fallthru
      _
    // Predicated region
    $region14: #{tpu_custom_call.1} parent=1 // pred_check
      _
    $region15: #{tpu_custom_call.1} parent=1 // pred_check_branch
      %18 = sbr.rel (0) target = $region17
    $region16: #{tpu_custom_call.1} parent=1 // pred_region
      _
    $region17: #{tpu_custom_call.1} parent=1 // pred_fallthru
      _
    // Predicated region
    $region18: #{tpu_custom_call.1} parent=1 // pred_check
      _
    $region19: #{tpu_custom_call.1} parent=1 // pred_check_branch
      %20 = sbr.rel (0) target = $region21
    $region20: #{tpu_custom_call.1} parent=1 // pred_region
      _
    $region21: #{tpu_custom_call.1} parent=1 // pred_fallthru
      _
    %v21 = vld [vmem:[%s0] sm:$0xff]
    %v22 = vld [vmem:[%s1] sm:$0xff]
    %v23 = vld [vmem:[%s1 + $0x8] sm:$0xff]
    %v24 = vld [vmem:[%s1 + $0x10] sm:$0xff]
    %v25 = vld [vmem:[%s1 + $0x18] sm:$0xff]
    %v26 = vld [vmem:[%s1 + $0x20] sm:$0xff]
    %v27 = vld [vmem:[%s1 + $0x28] sm:$0xff]
    %v28 = vld [vmem:[%s1 + $0x30] sm:$0xff]
    %v29 = vld [vmem:[%s1 + $0x38] sm:$0xff]
    %v30 = vld [vmem:[%s1 + $0x40] sm:$0xff]
    %v31 = vld [vmem:[%s1 + $0x48] sm:$0xff]
    %v32 = vld [vmem:[%s1 + $0x50] sm:$0xff]
    %v33 = vld [vmem:[%s1 + $0x58] sm:$0xff]
    %v34 = vld [vmem:[%s1 + $0x60] sm:$0xff]
    %v35 = vld [vmem:[%s1 + $0x68] sm:$0xff]
    %v36 = vld [vmem:[%s1 + $0x70] sm:$0xff]
    %v37 = vld [vmem:[%s1 + $0x78] sm:$0xff]
    %v38 = vld [vmem:[%s1 + $0x80] sm:$0xff]
    %v39 = vld [vmem:[%s1 + $0x88] sm:$0xff]
    %v40 = vld [vmem:[%s1 + $0x90] sm:$0xff]
    %v41 = vld [vmem:[%s1 + $0x98] sm:$0xff]
    %v42 = vld [vmem:[%s1 + $0xa0] sm:$0xff]
    %v43 = vld [vmem:[%s1 + $0xa8] sm:$0xff]
    %v44 = vld [vmem:[%s1 + $0xb0] sm:$0xff]
    %v45 = vld [vmem:[%s1 + $0xb8] sm:$0xff]
    %v46 = vld [vmem:[%s1 + $0xc0] sm:$0xff]
    %v47 = vld [vmem:[%s1 + $0xc8] sm:$0xff]
    %v48 = vld [vmem:[%s1 + $0xd0] sm:$0xff]
    %v49 = vld [vmem:[%s1 + $0xd8] sm:$0xff]
    %v50 = vld [vmem:[%s1 + $0xe0] sm:$0xff]
    %v51 = vld [vmem:[%s1 + $0xe8] sm:$0xff]
    %v52 = vld [vmem:[%s1 + $0xf0] sm:$0xff]
    %v53 = vld [vmem:[%s1 + $0xf8] sm:$0xff]
    %v54 = vld [vmem:[%s1 + $0x100] sm:$0xff]
    %v55 = vld [vmem:[%s1 + $0x108] sm:$0xff]
    %v56 = vld [vmem:[%s1 + $0x110] sm:$0xff]
    %v57 = vld [vmem:[%s1 + $0x118] sm:$0xff]
    %v58 = vld [vmem:[%s1 + $0x120] sm:$0xff]
    %v59 = vld [vmem:[%s1 + $0x128] sm:$0xff]
    %v60 = vld [vmem:[%s1 + $0x130] sm:$0xff]
    %v61 = vld [vmem:[%s1 + $0x138] sm:$0xff]
    %v62 = vld [vmem:[%s1 + $0x140] sm:$0xff]
    %v63 = vld [vmem:[%s1 + $0x148] sm:$0xff]
    %v64 = vld [vmem:[%s1 + $0x150] sm:$0xff]
    %v65 = vld [vmem:[%s1 + $0x158] sm:$0xff]
    %v66 = vld [vmem:[%s1 + $0x160] sm:$0xff]
    %v67 = vld [vmem:[%s1 + $0x168] sm:$0xff]
    %v68 = vld [vmem:[%s1 + $0x170] sm:$0xff]
    %v69 = vld [vmem:[%s1 + $0x178] sm:$0xff]
    %v70 = vld [vmem:[%s2] sm:$0xff]
    %v71 = vld [vmem:[%s2 + $0x8] sm:$0xff]
    %v72 = vld [vmem:[%s2 + $0x10] sm:$0xff]
    %v73 = vld [vmem:[%s2 + $0x18] sm:$0xff]
    %v74 = vld [vmem:[%s2 + $0x20] sm:$0xff]
    %v75 = vld [vmem:[%s2 + $0x28] sm:$0xff]
    %v76 = vld [vmem:[%s2 + $0x30] sm:$0xff]
    %v77 = vld [vmem:[%s2 + $0x38] sm:$0xff]
    %v78 = vld [vmem:[%s2 + $0x40] sm:$0xff]
    %v79 = vld [vmem:[%s2 + $0x48] sm:$0xff]
    %v80 = vld [vmem:[%s2 + $0x50] sm:$0xff]
    %v81 = vld [vmem:[%s2 + $0x58] sm:$0xff]
    %v82 = vld [vmem:[%s2 + $0x60] sm:$0xff]
    %v83 = vld [vmem:[%s2 + $0x68] sm:$0xff]
    %v84 = vld [vmem:[%s2 + $0x70] sm:$0xff]
    %v85 = vld [vmem:[%s2 + $0x78] sm:$0xff]
    %v86 = vld [vmem:[%s2 + $0x80] sm:$0xff]
    %v87 = vld [vmem:[%s2 + $0x88] sm:$0xff]
    %v88 = vld [vmem:[%s2 + $0x90] sm:$0xff]
    %v89 = vld [vmem:[%s2 + $0x98] sm:$0xff]
    %v90 = vld [vmem:[%s2 + $0xa0] sm:$0xff]
    %v91 = vld [vmem:[%s2 + $0xa8] sm:$0xff]
    %v92 = vld [vmem:[%s2 + $0xb0] sm:$0xff]
    %v93 = vld [vmem:[%s2 + $0xb8] sm:$0xff]
    %v94 = vld [vmem:[%s2 + $0xc0] sm:$0xff]
    %v95 = vld [vmem:[%s2 + $0xc8] sm:$0xff]
    %v96 = vld [vmem:[%s2 + $0xd0] sm:$0xff]
    %v97 = vld [vmem:[%s2 + $0xd8] sm:$0xff]
    %v98 = vld [vmem:[%s2 + $0xe0] sm:$0xff]
    %v99 = vld [vmem:[%s2 + $0xe8] sm:$0xff]
    %v100 = vld [vmem:[%s2 + $0xf0] sm:$0xff]
    %v101 = vld [vmem:[%s2 + $0xf8] sm:$0xff]
    %v102 = vld [vmem:[%s2 + $0x100] sm:$0xff]
    %v103 = vld [vmem:[%s2 + $0x108] sm:$0xff]
    %v104 = vld [vmem:[%s2 + $0x110] sm:$0xff]
    %v105 = vld [vmem:[%s2 + $0x118] sm:$0xff]
    %v106 = vld [vmem:[%s2 + $0x120] sm:$0xff]
    %v107 = vld [vmem:[%s2 + $0x128] sm:$0xff]
    %v108 = vld [vmem:[%s2 + $0x130] sm:$0xff]
    %v109 = vld [vmem:[%s2 + $0x138] sm:$0xff]
    %v110 = vld [vmem:[%s2 + $0x140] sm:$0xff]
    %v111 = vld [vmem:[%s2 + $0x148] sm:$0xff]
    %v112 = vld [vmem:[%s2 + $0x150] sm:$0xff]
    %v113 = vld [vmem:[%s2 + $0x158] sm:$0xff]
    %v114 = vld [vmem:[%s2 + $0x160] sm:$0xff]
    %v115 = vld [vmem:[%s2 + $0x168] sm:$0xff]
    %v116 = vld [vmem:[%s2 + $0x170] sm:$0xff]
    %v117 = vld [vmem:[%s2 + $0x178] sm:$0xff]
    %119 = vset.pattern.permute.xlu0 0
    %120 = vperm.xlu0 %119, %v70
    %v121 = vpop.permute.xlu0 %120
    %124 = vset.pattern.permute.xlu0 0
    %125 = vperm.xlu0 %124, %v71
    %v126 = vpop.permute.xlu0 %125
    %129 = vset.pattern.permute.xlu0 0
    %130 = vperm.xlu0 %129, %v72
    %v131 = vpop.permute.xlu0 %130
    %134 = vset.pattern.permute.xlu0 0
    %135 = vperm.xlu0 %134, %v73
    %v136 = vpop.permute.xlu0 %135
    %139 = vset.pattern.permute.xlu0 0
    %140 = vperm.xlu0 %139, %v74
    %v141 = vpop.permute.xlu0 %140
    %144 = vset.pattern.permute.xlu0 0
    %145 = vperm.xlu0 %144, %v75
    %v146 = vpop.permute.xlu0 %145
    %149 = vset.pattern.permute.xlu0 0
    %150 = vperm.xlu0 %149, %v76
    %v151 = vpop.permute.xlu0 %150
    %154 = vset.pattern.permute.xlu0 0
    %155 = vperm.xlu0 %154, %v77
    %v156 = vpop.permute.xlu0 %155
    %159 = vset.pattern.permute.xlu0 0
    %160 = vperm.xlu0 %159, %v78
    %v161 = vpop.permute.xlu0 %160
    %164 = vset.pattern.permute.xlu0 0
    %165 = vperm.xlu0 %164, %v79
    %v166 = vpop.permute.xlu0 %165
    %169 = vset.pattern.permute.xlu0 0
    %170 = vperm.xlu0 %169, %v80
    %v171 = vpop.permute.xlu0 %170
    %174 = vset.pattern.permute.xlu0 0
    %175 = vperm.xlu0 %174, %v81
    %v176 = vpop.permute.xlu0 %175
    %179 = vset.pattern.permute.xlu0 0
    %180 = vperm.xlu0 %179, %v82
    %v181 = vpop.permute.xlu0 %180
    %184 = vset.pattern.permute.xlu0 0
    %185 = vperm.xlu0 %184, %v83
    %v186 = vpop.permute.xlu0 %185
    %189 = vset.pattern.permute.xlu0 0
    %190 = vperm.xlu0 %189, %v84
    %v191 = vpop.permute.xlu0 %190
    %194 = vset.pattern.permute.xlu0 0
    %195 = vperm.xlu0 %194, %v85
    %v196 = vpop.permute.xlu0 %195
    %199 = vset.pattern.permute.xlu0 0
    %200 = vperm.xlu0 %199, %v86
    %v201 = vpop.permute.xlu0 %200
    %204 = vset.pattern.permute.xlu0 0
    %205 = vperm.xlu0 %204, %v87
    %v206 = vpop.permute.xlu0 %205
    %209 = vset.pattern.permute.xlu0 0
    %210 = vperm.xlu0 %209, %v88
    %v211 = vpop.permute.xlu0 %210
    %214 = vset.pattern.permute.xlu0 0
    %215 = vperm.xlu0 %214, %v89
    %v216 = vpop.permute.xlu0 %215
    %219 = vset.pattern.permute.xlu0 0
    %220 = vperm.xlu0 %219, %v90
    %v221 = vpop.permute.xlu0 %220
    %224 = vset.pattern.permute.xlu0 0
    %225 = vperm.xlu0 %224, %v91
    %v226 = vpop.permute.xlu0 %225
    %229 = vset.pattern.permute.xlu0 0
    %230 = vperm.xlu0 %229, %v92
    %v231 = vpop.permute.xlu0 %230
    %234 = vset.pattern.permute.xlu0 0
    %235 = vperm.xlu0 %234, %v93
    %v236 = vpop.permute.xlu0 %235
    %239 = vset.pattern.permute.xlu0 0
    %240 = vperm.xlu0 %239, %v94
    %v241 = vpop.permute.xlu0 %240
    %244 = vset.pattern.permute.xlu0 0
    %245 = vperm.xlu0 %244, %v95
    %v246 = vpop.permute.xlu0 %245
    %249 = vset.pattern.permute.xlu0 0
    %250 = vperm.xlu0 %249, %v96
    %v251 = vpop.permute.xlu0 %250
    %254 = vset.pattern.permute.xlu0 0
    %255 = vperm.xlu0 %254, %v97
    %v256 = vpop.permute.xlu0 %255
    %259 = vset.pattern.permute.xlu0 0
    %260 = vperm.xlu0 %259, %v98
    %v261 = vpop.permute.xlu0 %260
    %264 = vset.pattern.permute.xlu0 0
    %265 = vperm.xlu0 %264, %v99
    %v266 = vpop.permute.xlu0 %265
    %269 = vset.pattern.permute.xlu0 0
    %270 = vperm.xlu0 %269, %v100
    %v271 = vpop.permute.xlu0 %270
    %274 = vset.pattern.permute.xlu0 0
    %275 = vperm.xlu0 %274, %v101
    %v276 = vpop.permute.xlu0 %275
    %279 = vset.pattern.permute.xlu0 0
    %280 = vperm.xlu0 %279, %v102
    %v281 = vpop.permute.xlu0 %280
    %284 = vset.pattern.permute.xlu0 0
    %285 = vperm.xlu0 %284, %v103
    %v286 = vpop.permute.xlu0 %285
    %289 = vset.pattern.permute.xlu0 0
    %290 = vperm.xlu0 %289, %v104
    %v291 = vpop.permute.xlu0 %290
    %294 = vset.pattern.permute.xlu0 0
    %295 = vperm.xlu0 %294, %v105
    %v296 = vpop.permute.xlu0 %295
    %299 = vset.pattern.permute.xlu0 0
    %300 = vperm.xlu0 %299, %v106
    %v301 = vpop.permute.xlu0 %300
    %304 = vset.pattern.permute.xlu0 0
    %305 = vperm.xlu0 %304, %v107
    %v306 = vpop.permute.xlu0 %305
    %309 = vset.pattern.permute.xlu0 0
    %310 = vperm.xlu0 %309, %v108
    %v311 = vpop.permute.xlu0 %310
    %314 = vset.pattern.permute.xlu0 0
    %315 = vperm.xlu0 %314, %v109
    %v316 = vpop.permute.xlu0 %315
    %319 = vset.pattern.permute.xlu0 0
    %320 = vperm.xlu0 %319, %v110
    %v321 = vpop.permute.xlu0 %320
    %324 = vset.pattern.permute.xlu0 0
    %325 = vperm.xlu0 %324, %v111
    %v326 = vpop.permute.xlu0 %325
    %329 = vset.pattern.permute.xlu0 0
    %330 = vperm.xlu0 %329, %v112
    %v331 = vpop.permute.xlu0 %330
    %334 = vset.pattern.permute.xlu0 0
    %335 = vperm.xlu0 %334, %v113
    %v336 = vpop.permute.xlu0 %335
    %339 = vset.pattern.permute.xlu0 0
    %340 = vperm.xlu0 %339, %v114
    %v341 = vpop.permute.xlu0 %340
    %344 = vset.pattern.permute.xlu0 0
    %345 = vperm.xlu0 %344, %v115
    %v346 = vpop.permute.xlu0 %345
    %349 = vset.pattern.permute.xlu0 0
    %350 = vperm.xlu0 %349, %v116
    %v351 = vpop.permute.xlu0 %350
    %354 = vset.pattern.permute.xlu0 0
    %355 = vperm.xlu0 %354, %v117
    %v356 = vpop.permute.xlu0 %355
    %vm358 = vcmask 64512
    %v360 = vsel %vm358, %v22, 0
    %v363 = vsel %vm358, %v23, 0
    %v366 = vsel %vm358, %v24, 0
    %v369 = vsel %vm358, %v25, 0
    %v372 = vsel %vm358, %v26, 0
    %v375 = vsel %vm358, %v27, 0
    %v378 = vsel %vm358, %v28, 0
    %v381 = vsel %vm358, %v29, 0
    %v384 = vsel %vm358, %v30, 0
    %v387 = vsel %vm358, %v31, 0
    %v390 = vsel %vm358, %v32, 0
    %v393 = vsel %vm358, %v33, 0
    %v396 = vsel %vm358, %v34, 0
    %v399 = vsel %vm358, %v35, 0
    %v402 = vsel %vm358, %v36, 0
    %v405 = vsel %vm358, %v37, 0
    %v408 = vsel %vm358, %v38, 0
    %v411 = vsel %vm358, %v39, 0
    %v414 = vsel %vm358, %v40, 0
    %v417 = vsel %vm358, %v41, 0
    %v420 = vsel %vm358, %v42, 0
    %v423 = vsel %vm358, %v43, 0
    %v426 = vsel %vm358, %v44, 0
    %v429 = vsel %vm358, %v45, 0
    %v432 = vsel %vm358, %v46, 0
    %v435 = vsel %vm358, %v47, 0
    %v438 = vsel %vm358, %v48, 0
    %v441 = vsel %vm358, %v49, 0
    %v444 = vsel %vm358, %v50, 0
    %v447 = vsel %vm358, %v51, 0
    %v450 = vsel %vm358, %v52, 0
    %v453 = vsel %vm358, %v53, 0
    %v456 = vsel %vm358, %v54, 0
    %v459 = vsel %vm358, %v55, 0
    %v462 = vsel %vm358, %v56, 0
    %v465 = vsel %vm358, %v57, 0
    %v468 = vsel %vm358, %v58, 0
    %v471 = vsel %vm358, %v59, 0
    %v474 = vsel %vm358, %v60, 0
    %v477 = vsel %vm358, %v61, 0
    %v480 = vsel %vm358, %v62, 0
    %v483 = vsel %vm358, %v63, 0
    %v486 = vsel %vm358, %v64, 0
    %v489 = vsel %vm358, %v65, 0
    %v492 = vsel %vm358, %v66, 0
    %v495 = vsel %vm358, %v67, 0
    %v498 = vsel %vm358, %v68, 0
    %v501 = vsel %vm358, %v69, 0
    %503 = vmatpush.msra.mxu0 0.0
    %504 = vmatpush.msra.mxu0 0.0
    %505 = vmatpush.msra.mxu0 0.0
    %506 = vmatpush.msra.mxu0 0.0
    %507 = vmatpush.msra.mxu0 0.0
    %508 = vmatpush.msra.mxu0 0.0
    %509 = vmatpush.msra.mxu0 0.0
    %510 = vmatpush.msra.mxu0 0.0
    %511 = vmatpush.msra.mxu0 0.0
    %512 = vmatpush.msra.mxu0 0.0
    %513 = vmatpush.msra.mxu0 0.0
    %514 = vmatpush.msra.mxu0 0.0
    %515 = vmatpush.msra.mxu0 0.0
    %516 = vmatpush.msra.mxu0 0.0
    %517 = vmatpush.msra.mxu0 0.0
    %518 = vmatpush.msra.mxu0 %v21
    %519 = vmatmul.f32.gmra.mxu0 %v360
    %v520 = vpop.f32.mrf.mxu0
    %v521 = vadd.f32 %v121, %v520
    %522 = vmatmul.f32.gmra.mxu0 %v363
    %v523 = vpop.f32.mrf.mxu0
    %v524 = vadd.f32 %v126, %v523
    %525 = vmatmul.f32.gmra.mxu0 %v366
    %v526 = vpop.f32.mrf.mxu0
    %v527 = vadd.f32 %v131, %v526
    %528 = vmatmul.f32.gmra.mxu0 %v369
    %v529 = vpop.f32.mrf.mxu0
    %v530 = vadd.f32 %v136, %v529
    %531 = vmatmul.f32.gmra.mxu0 %v372
    %v532 = vpop.f32.mrf.mxu0
    %v533 = vadd.f32 %v141, %v532
    %534 = vmatmul.f32.gmra.mxu0 %v375
    %v535 = vpop.f32.mrf.mxu0
    %v536 = vadd.f32 %v146, %v535
    %537 = vmatmul.f32.gmra.mxu0 %v378
    %v538 = vpop.f32.mrf.mxu0
    %v539 = vadd.f32 %v151, %v538
    %540 = vmatmul.f32.gmra.mxu0 %v381
    %v541 = vpop.f32.mrf.mxu0
    %v542 = vadd.f32 %v156, %v541
    %543 = vmatmul.f32.gmra.mxu0 %v384
    %v544 = vpop.f32.mrf.mxu0
    %v545 = vadd.f32 %v161, %v544
    %546 = vmatmul.f32.gmra.mxu0 %v387
    %v547 = vpop.f32.mrf.mxu0
    %v548 = vadd.f32 %v166, %v547
    %549 = vmatmul.f32.gmra.mxu0 %v390
    %v550 = vpop.f32.mrf.mxu0
    %v551 = vadd.f32 %v171, %v550
    %552 = vmatmul.f32.gmra.mxu0 %v393
    %v553 = vpop.f32.mrf.mxu0
    %v554 = vadd.f32 %v176, %v553
    %555 = vmatmul.f32.gmra.mxu0 %v396
    %v556 = vpop.f32.mrf.mxu0
    %v557 = vadd.f32 %v181, %v556
    %558 = vmatmul.f32.gmra.mxu0 %v399
    %v559 = vpop.f32.mrf.mxu0
    %v560 = vadd.f32 %v186, %v559
    %561 = vmatmul.f32.gmra.mxu0 %v402
    %v562 = vpop.f32.mrf.mxu0
    %v563 = vadd.f32 %v191, %v562
    %564 = vmatmul.f32.gmra.mxu0 %v405
    %v565 = vpop.f32.mrf.mxu0
    %v566 = vadd.f32 %v196, %v565
    %567 = vmatmul.f32.gmra.mxu0 %v408
    %v568 = vpop.f32.mrf.mxu0
    %v569 = vadd.f32 %v201, %v568
    %570 = vmatmul.f32.gmra.mxu0 %v411
    %v571 = vpop.f32.mrf.mxu0
    %v572 = vadd.f32 %v206, %v571
    %573 = vmatmul.f32.gmra.mxu0 %v414
    %v574 = vpop.f32.mrf.mxu0
    %v575 = vadd.f32 %v211, %v574
    %576 = vmatmul.f32.gmra.mxu0 %v417
    %v577 = vpop.f32.mrf.mxu0
    %v578 = vadd.f32 %v216, %v577
    %579 = vmatmul.f32.gmra.mxu0 %v420
    %v580 = vpop.f32.mrf.mxu0
    %v581 = vadd.f32 %v221, %v580
    %582 = vmatmul.f32.gmra.mxu0 %v423
    %v583 = vpop.f32.mrf.mxu0
    %v584 = vadd.f32 %v226, %v583
    %585 = vmatmul.f32.gmra.mxu0 %v426
    %v586 = vpop.f32.mrf.mxu0
    %v587 = vadd.f32 %v231, %v586
    %588 = vmatmul.f32.gmra.mxu0 %v429
    %v589 = vpop.f32.mrf.mxu0
    %v590 = vadd.f32 %v236, %v589
    %591 = vmatmul.f32.gmra.mxu0 %v432
    %v592 = vpop.f32.mrf.mxu0
    %v593 = vadd.f32 %v241, %v592
    %594 = vmatmul.f32.gmra.mxu0 %v435
    %v595 = vpop.f32.mrf.mxu0
    %v596 = vadd.f32 %v246, %v595
    %597 = vmatmul.f32.gmra.mxu0 %v438
    %v598 = vpop.f32.mrf.mxu0
    %v599 = vadd.f32 %v251, %v598
    %600 = vmatmul.f32.gmra.mxu0 %v441
    %v601 = vpop.f32.mrf.mxu0
    %v602 = vadd.f32 %v256, %v601
    %603 = vmatmul.f32.gmra.mxu0 %v444
    %v604 = vpop.f32.mrf.mxu0
    %v605 = vadd.f32 %v261, %v604
    %606 = vmatmul.f32.gmra.mxu0 %v447
    %v607 = vpop.f32.mrf.mxu0
    %v608 = vadd.f32 %v266, %v607
    %609 = vmatmul.f32.gmra.mxu0 %v450
    %v610 = vpop.f32.mrf.mxu0
    %v611 = vadd.f32 %v271, %v610
    %612 = vmatmul.f32.gmra.mxu0 %v453
    %v613 = vpop.f32.mrf.mxu0
    %v614 = vadd.f32 %v276, %v613
    %615 = vmatmul.f32.gmra.mxu0 %v456
    %v616 = vpop.f32.mrf.mxu0
    %v617 = vadd.f32 %v281, %v616
    %618 = vmatmul.f32.gmra.mxu0 %v459
    %v619 = vpop.f32.mrf.mxu0
    %v620 = vadd.f32 %v286, %v619
    %621 = vmatmul.f32.gmra.mxu0 %v462
    %v622 = vpop.f32.mrf.mxu0
    %v623 = vadd.f32 %v291, %v622
    %624 = vmatmul.f32.gmra.mxu0 %v465
    %v625 = vpop.f32.mrf.mxu0
    %v626 = vadd.f32 %v296, %v625
    %627 = vmatmul.f32.gmra.mxu0 %v468
    %v628 = vpop.f32.mrf.mxu0
    %v629 = vadd.f32 %v301, %v628
    %630 = vmatmul.f32.gmra.mxu0 %v471
    %v631 = vpop.f32.mrf.mxu0
    %v632 = vadd.f32 %v306, %v631
    %633 = vmatmul.f32.gmra.mxu0 %v474
    %v634 = vpop.f32.mrf.mxu0
    %v635 = vadd.f32 %v311, %v634
    %636 = vmatmul.f32.gmra.mxu0 %v477
    %v637 = vpop.f32.mrf.mxu0
    %v638 = vadd.f32 %v316, %v637
    %639 = vmatmul.f32.gmra.mxu0 %v480
    %v640 = vpop.f32.mrf.mxu0
    %v641 = vadd.f32 %v321, %v640
    %642 = vmatmul.f32.gmra.mxu0 %v483
    %v643 = vpop.f32.mrf.mxu0
    %v644 = vadd.f32 %v326, %v643
    %645 = vmatmul.f32.gmra.mxu0 %v486
    %v646 = vpop.f32.mrf.mxu0
    %v647 = vadd.f32 %v331, %v646
    %648 = vmatmul.f32.gmra.mxu0 %v489
    %v649 = vpop.f32.mrf.mxu0
    %v650 = vadd.f32 %v336, %v649
    %651 = vmatmul.f32.gmra.mxu0 %v492
    %v652 = vpop.f32.mrf.mxu0
    %v653 = vadd.f32 %v341, %v652
    %654 = vmatmul.f32.gmra.mxu0 %v495
    %v655 = vpop.f32.mrf.mxu0
    %v656 = vadd.f32 %v346, %v655
    %657 = vmatmul.f32.gmra.mxu0 %v498
    %v658 = vpop.f32.mrf.mxu0
    %v659 = vadd.f32 %v351, %v658
    %660 = vmatmul.f32.gmra.mxu0 %v501
    %v661 = vpop.f32.mrf.mxu0
    %v662 = vadd.f32 %v356, %v661
    %663 = vdwg.mxu0
    %v664 = vmax.f32 %v521, 0.0
    %v665 = vmax.f32 %v524, 0.0
    %v666 = vmax.f32 %v527, 0.0
    %v667 = vmax.f32 %v530, 0.0
    %v668 = vmax.f32 %v533, 0.0
    %v669 = vmax.f32 %v536, 0.0
    %v670 = vmax.f32 %v539, 0.0
    %v671 = vmax.f32 %v542, 0.0
    %v672 = vmax.f32 %v545, 0.0
    %v673 = vmax.f32 %v548, 0.0
    %v674 = vmax.f32 %v551, 0.0
    %v675 = vmax.f32 %v554, 0.0
    %v676 = vmax.f32 %v557, 0.0
    %v677 = vmax.f32 %v560, 0.0
    %v678 = vmax.f32 %v563, 0.0
    %v679 = vmax.f32 %v566, 0.0
    %v680 = vmax.f32 %v569, 0.0
    %v681 = vmax.f32 %v572, 0.0
    %v682 = vmax.f32 %v575, 0.0
    %v683 = vmax.f32 %v578, 0.0
    %v684 = vmax.f32 %v581, 0.0
    %v685 = vmax.f32 %v584, 0.0
    %v686 = vmax.f32 %v587, 0.0
    %v687 = vmax.f32 %v590, 0.0
    %v688 = vmax.f32 %v593, 0.0
    %v689 = vmax.f32 %v596, 0.0
    %v690 = vmax.f32 %v599, 0.0
    %v691 = vmax.f32 %v602, 0.0
    %v692 = vmax.f32 %v605, 0.0
    %v693 = vmax.f32 %v608, 0.0
    %v694 = vmax.f32 %v611, 0.0
    %v695 = vmax.f32 %v614, 0.0
    %v696 = vmax.f32 %v617, 0.0
    %v697 = vmax.f32 %v620, 0.0
    %v698 = vmax.f32 %v623, 0.0
    %v699 = vmax.f32 %v626, 0.0
    %v700 = vmax.f32 %v629, 0.0
    %v701 = vmax.f32 %v632, 0.0
    %v702 = vmax.f32 %v635, 0.0
    %v703 = vmax.f32 %v638, 0.0
    %v704 = vmax.f32 %v641, 0.0
    %v705 = vmax.f32 %v644, 0.0
    %v706 = vmax.f32 %v647, 0.0
    %v707 = vmax.f32 %v650, 0.0
    %v708 = vmax.f32 %v653, 0.0
    %v709 = vmax.f32 %v656, 0.0
    %v710 = vmax.f32 %v659, 0.0
    %v711 = vmax.f32 %v662, 0.0
    %v712 = vmin.f32 %v664, 6.0
    %v713 = vmin.f32 %v665, 6.0
    %v714 = vmin.f32 %v666, 6.0
    %v715 = vmin.f32 %v667, 6.0
    %v716 = vmin.f32 %v668, 6.0
    %v717 = vmin.f32 %v669, 6.0
    %v718 = vmin.f32 %v670, 6.0
    %v719 = vmin.f32 %v671, 6.0
    %v720 = vmin.f32 %v672, 6.0
    %v721 = vmin.f32 %v673, 6.0
    %v722 = vmin.f32 %v674, 6.0
    %v723 = vmin.f32 %v675, 6.0
    %v724 = vmin.f32 %v676, 6.0
    %v725 = vmin.f32 %v677, 6.0
    %v726 = vmin.f32 %v678, 6.0
    %v727 = vmin.f32 %v679, 6.0
    %v728 = vmin.f32 %v680, 6.0
    %v729 = vmin.f32 %v681, 6.0
    %v730 = vmin.f32 %v682, 6.0
    %v731 = vmin.f32 %v683, 6.0
    %v732 = vmin.f32 %v684, 6.0
    %v733 = vmin.f32 %v685, 6.0
    %v734 = vmin.f32 %v686, 6.0
    %v735 = vmin.f32 %v687, 6.0
    %v736 = vmin.f32 %v688, 6.0
    %v737 = vmin.f32 %v689, 6.0
    %v738 = vmin.f32 %v690, 6.0
    %v739 = vmin.f32 %v691, 6.0
    %v740 = vmin.f32 %v692, 6.0
    %v741 = vmin.f32 %v693, 6.0
    %v742 = vmin.f32 %v694, 6.0
    %v743 = vmin.f32 %v695, 6.0
    %v744 = vmin.f32 %v696, 6.0
    %v745 = vmin.f32 %v697, 6.0
    %v746 = vmin.f32 %v698, 6.0
    %v747 = vmin.f32 %v699, 6.0
    %v748 = vmin.f32 %v700, 6.0
    %v749 = vmin.f32 %v701, 6.0
    %v750 = vmin.f32 %v702, 6.0
    %v751 = vmin.f32 %v703, 6.0
    %v752 = vmin.f32 %v704, 6.0
    %v753 = vmin.f32 %v705, 6.0
    %v754 = vmin.f32 %v706, 6.0
    %v755 = vmin.f32 %v707, 6.0
    %v756 = vmin.f32 %v708, 6.0
    %v757 = vmin.f32 %v709, 6.0
    %v758 = vmin.f32 %v710, 6.0
    %v759 = vmin.f32 %v711, 6.0
    %v760 = vld [vmem:[%s3] sm:$0xff]
    %v761 = vld [vmem:[%s3 + $0x8] sm:$0xff]
    %v762 = vld [vmem:[%s3 + $0x10] sm:$0xff]
    %v763 = vld [vmem:[%s4] sm:$0xff]
    %765 = vset.pattern.permute.xlu0 0
    %766 = vperm.xlu0 %765, %v763
    %v767 = vpop.permute.xlu0 %766
    %769 = vmatpush.msra.mxu0 %v727
    %770 = vmatpush.msra.mxu0 %v726
    %771 = vmatpush.msra.mxu0 %v725
    %772 = vmatpush.msra.mxu0 %v724
    %773 = vmatpush.msra.mxu0 %v723
    %774 = vmatpush.msra.mxu0 %v722
    %775 = vmatpush.msra.mxu0 %v721
    %776 = vmatpush.msra.mxu0 %v720
    %777 = vmatpush.msra.mxu0 %v719
    %778 = vmatpush.msra.mxu0 %v718
    %779 = vmatpush.msra.mxu0 %v717
    %780 = vmatpush.msra.mxu0 %v716
    %781 = vmatpush.msra.mxu0 %v715
    %782 = vmatpush.msra.mxu0 %v714
    %783 = vmatpush.msra.mxu0 %v713
    %784 = vmatpush.msra.mxu0 %v712
    %785 = vmatmul.f32.gmra.mxu0 %v760
    %v786 = vpop.f32.mrf.mxu0
    %v787 = vadd.f32 %v767, %v786
    %788 = vdwg.mxu0
    %789 = vmatpush.msra.mxu0 %v743
    %790 = vmatpush.msra.mxu0 %v742
    %791 = vmatpush.msra.mxu0 %v741
    %792 = vmatpush.msra.mxu0 %v740
    %793 = vmatpush.msra.mxu0 %v739
    %794 = vmatpush.msra.mxu0 %v738
    %795 = vmatpush.msra.mxu0 %v737
    %796 = vmatpush.msra.mxu0 %v736
    %797 = vmatpush.msra.mxu0 %v735
    %798 = vmatpush.msra.mxu0 %v734
    %799 = vmatpush.msra.mxu0 %v733
    %800 = vmatpush.msra.mxu0 %v732
    %801 = vmatpush.msra.mxu0 %v731
    %802 = vmatpush.msra.mxu0 %v730
    %803 = vmatpush.msra.mxu0 %v729
    %804 = vmatpush.msra.mxu0 %v728
    %805 = vmatmul.f32.gmra.mxu0 %v761
    %v806 = vpop.f32.mrf.mxu0
    %v807 = vadd.f32 %v787, %v806
    %808 = vdwg.mxu0
    %809 = vmatpush.msra.mxu0 %v759
    %810 = vmatpush.msra.mxu0 %v758
    %811 = vmatpush.msra.mxu0 %v757
    %812 = vmatpush.msra.mxu0 %v756
    %813 = vmatpush.msra.mxu0 %v755
    %814 = vmatpush.msra.mxu0 %v754
    %815 = vmatpush.msra.mxu0 %v753
    %816 = vmatpush.msra.mxu0 %v752
    %817 = vmatpush.msra.mxu0 %v751
    %818 = vmatpush.msra.mxu0 %v750
    %819 = vmatpush.msra.mxu0 %v749
    %820 = vmatpush.msra.mxu0 %v748
    %821 = vmatpush.msra.mxu0 %v747
    %822 = vmatpush.msra.mxu0 %v746
    %823 = vmatpush.msra.mxu0 %v745
    %824 = vmatpush.msra.mxu0 %v744
    %825 = vmatmul.f32.gmra.mxu0 %v762
    %v826 = vpop.f32.mrf.mxu0
    %v827 = vadd.f32 %v807, %v826
    %828 = vdwg.mxu0
    %v829 = vtanh.pop %v827
    %v830 = vmul.f32 %v829, 2.0
    %v831 = vmax.f32 %v827, 0.0
    %v832 = vand.u32 2147483647, %v827
    %v833 = vsub.f32 0.0, %v832
    %v834 = vmul.f32 %v833, 1.442695
    %v835 = vpow.pop %v834
    %v836 = vadd.f32 %v835, 1.0
    %v837 = vlog2.pop %v836
    %v838 = vmul.f32 %v837, 0.6931472
    %v839 = vmul.f32 -0.5, %v835
    %v840 = vadd.f32 %v839, 1.0
    %v841 = vmul.f32 %v840, %v835
    %v842 = vand.u32 2147483647, %v835
    %vm843 = vcmp.lt.f32.partialorder %v842, 0.0004427343
    %v844 = vsel %vm843, %v841, %v838
    %v845 = vadd.f32 %v831, %v844
    %v846 = vadd.f32 %v845, 0.0001
    %v847 = vlaneseq
    %v848 = vshrl.u32 %v847, 7
    %vm849 = vcmp.lt.s32.totalorder %v848, 2
    %vm850 = vcmp.lt.s32.totalorder %v848, 4
    %v851 = vsel %vm850, %v846, %v827
    %v852 = vsel %vm849, %v830, %v851
    %853 = vst [vmem:[#allocation2] sm:$0xff] %v852
    // Predicated region
    $region22: #{tpu_custom_call.1} parent=1 // pred_check
      _
    $region23: #{tpu_custom_call.1} parent=1 // pred_check_branch
      %855 = sbr.rel (0) target = $region25
    $region24: #{tpu_custom_call.1} parent=1 // pred_region
      %857 = vsyncadd [#allocation3], 0
      %s859 = sshll.u32 [#allocation2], 4
      %s860 = int_to_ptr.vmem [resolvable:$true] %s859
      %s861 = sshll.u32 %s5, 4
      %s862 = int_to_ptr.hbm [resolvable:$true] %s861
      %864 = dma.vmem_to_hbm [thread:$0]  %s860, 128, %s862, [#allocation3]
    $region25: #{tpu_custom_call.1} parent=1 // pred_fallthru
      _
    // Predicated region
    $region26: #{tpu_custom_call.1} parent=1 // pred_check
      _
    $region27: #{tpu_custom_call.1} parent=1 // pred_check_branch
      %866 = sbr.rel (0) target = $region29
    $region28: #{tpu_custom_call.1} parent=1 // pred_region
      %868 = dma.done [#allocation3], 128
    $region29: #{tpu_custom_call.1} parent=1 // pred_fallthru
      _
    %869 = vsyncpa [#allocation3], 1

</llo_original>
